<compile_context>
chip_gen: v7x
topology: tpu7x:2x2x1
jax: 0.10.0
libtpu: 0.0.40
codegen_flags: <defaults>
</compile_context>

<pallas_src>
import functools

import numpy as np
import jax
import jax.numpy as jnp
from jax.experimental import pallas as pl
from jax.experimental.pallas import tpu as pltpu


# --------------------------------------------------------------------------
# host-side constants / sizing helpers
# --------------------------------------------------------------------------
@functools.lru_cache(maxsize=None)
def _boundary_masks(h, w):
    """(4, h*w) f32 0/1 masks: [col>=1, col<=w-2, row>=1, row<=h-2]."""
    rr, cc = np.meshgrid(np.arange(h), np.arange(w), indexing="ij")
    m = np.stack([cc >= 1, cc <= w - 2, rr >= 1, rr <= h - 2])
    return jnp.asarray(m.reshape(4, h * w).astype(np.float32))


def _vmem_budget():
    """Per-block x/out budget and scoped-VMEM limit, per TPU generation."""
    try:
        cap = int(pltpu.get_tpu_info().vmem_capacity_bytes)
    except Exception:  # unknown / emulated target: assume the smallest (v7x)
        cap = 64 << 20
    block_budget = max(1 << 20, cap // 16)       # double-buffered in+out ~ 4x
    vmem_limit = min((3 * cap) // 4, 96 << 20)   # above every default, < phys
    return block_budget, vmem_limit


def _pick_row_block(rows, hw, budget_bytes):
    """Row-strip size (rows = N*C planes).  Biggest 8-multiple divisor of
    `rows` that fits the budget; force >=2 grid steps when rows >= 16 so both
    v7x TensorCores get work.  Small inputs stay a single whole-array block."""
    bytes_per_row = hw * 4
    if rows * bytes_per_row <= budget_bytes and rows < 16:
        return rows
    if rows % 8 == 0:
        divisors = [d for d in range(8, rows, 8) if rows % d == 0]
        for d in sorted(divisors, reverse=True):
            if d * bytes_per_row <= budget_bytes and rows // d >= 2:
                return d
        if divisors:
            # TODO(synk): for very large H*W (even 8 rows blow the budget) fall
            # back to spatial row-strip tiling with +-1 halo rows instead of
            # whole-plane lane rolls.
            return divisors[0]
    return rows


# --------------------------------------------------------------------------
# kernel: full DirectCurrent forward on a (rows, H*W) slab
# --------------------------------------------------------------------------
def _dc_kernel(x_ref, p_ref, m_ref, o_ref, *, width):
    x = x_ref[...]                                   # (R, HW) f32
    hw = x.shape[-1]
    p = p_ref[...]                                   # (R, 16): [w-1, k0..k8, bias, pad]
    m = m_ref[...]                                   # (4, HW): colL, colR, rowT, rowB

    # per-row (= per (n, c) plane) spatial mean; conv input z = x + mean*(w-1)
    mean = jnp.sum(x, axis=-1, keepdims=True) * (1.0 / float(hw))
    z = x + mean * p[:, 0:1]

    # ---- separable 3x3 depthwise conv, zero padding ------------------------
    # stage 1: column-shifted variants (dj = -1, +1); col masks zero out the
    # padding columns.  pltpu.roll(v, s)[i] == v[(i - s) mod HW].
    c_m1 = pltpu.roll(z, shift=1, axis=1) * m[0:1, :]        # z[., col-1]
    c_p1 = pltpu.roll(z, shift=hw - 1, axis=1) * m[1:2, :]   # z[., col+1]

    # stage 2: per-di weighted sums; tap k = (di+1)*3 + (dj+1) lives at lane 1+k
    s_m1 = p[:, 1:2] * c_m1 + p[:, 2:3] * z + p[:, 3:4] * c_p1   # di = -1
    s_0 = p[:, 4:5] * c_m1 + p[:, 5:6] * z + p[:, 6:7] * c_p1    # di =  0
    s_p1 = p[:, 7:8] * c_m1 + p[:, 8:9] * z + p[:, 9:10] * c_p1  # di = +1

    # stage 3: shift the di = +-1 groups by one image row; row masks zero out
    # the padding rows (column masks commute with +-W shifts mod H*W).
    acc = p[:, 10:11] + s_0
    acc = acc + pltpu.roll(s_m1, shift=width, axis=1) * m[2:3, :]
    acc = acc + pltpu.roll(s_p1, shift=hw - width, axis=1) * m[3:4, :]

    # residual
    o_ref[...] = x + acc


# --------------------------------------------------------------------------
# wrapper
# --------------------------------------------------------------------------
def direct_current_forward(x, weight, fuse_w, fuse_b):
    """x: (N, C, H, W); weight: (C,1,1); fuse_w: (C,1,3,3); fuse_b: (C,)."""
    n, c, h, w = x.shape
    hw = h * w
    rows = n * c

    xf = x.reshape(rows, hw).astype(jnp.float32)

    # one per-row parameter slab: lane 0 = (weight-1), lanes 1..9 = conv taps
    # (row-major 3x3), lane 10 = bias, lanes 11..15 = pad.
    params_c = jnp.concatenate([
        weight.reshape(c, 1).astype(jnp.float32) - 1.0,
        fuse_w.reshape(c, 9).astype(jnp.float32),
        fuse_b.reshape(c, 1).astype(jnp.float32),
        jnp.zeros((c, 5), jnp.float32),
    ], axis=1)                                     # (C, 16)
    params = jnp.tile(params_c, (n, 1))            # (rows, 16)

    masks = _boundary_masks(h, w)                  # (4, HW)

    block_budget, vmem_limit = _vmem_budget()
    row_blk = _pick_row_block(rows, hw, block_budget)
    grid = (rows // row_blk,)

    flops = 30 * rows * hw
    bytes_accessed = 8 * rows * hw + 64 * rows + 16 * hw

    # NOTE: input_output_aliases={0: 0} would let XLA reuse x's HBM buffer,
    # but it is omitted here because the demo reuses x after the call (XLA
    # would insert a defensive copy, adding HBM traffic instead of saving it).
    out = pl.pallas_call(
        functools.partial(_dc_kernel, width=w),
        out_shape=jax.ShapeDtypeStruct((rows, hw), jnp.float32),
        grid=grid,
        in_specs=[
            pl.BlockSpec((row_blk, hw), lambda i: (i, 0)),
            pl.BlockSpec((row_blk, 16), lambda i: (i, 0)),
            pl.BlockSpec((4, hw), lambda i: (0, 0)),
        ],
        out_specs=pl.BlockSpec((row_blk, hw), lambda i: (i, 0)),
        compiler_params=pltpu.CompilerParams(
            dimension_semantics=("parallel",),
            vmem_limit_bytes=vmem_limit),
        cost_estimate=pl.CostEstimate(
            flops=flops, transcendentals=0, bytes_accessed=bytes_accessed),
    )(xf, params, masks)
    return out.reshape(n, c, h, w)


direct_current = jax.jit(direct_current_forward)


# --------------------------------------------------------------------------
# pure-JAX reference (mirrors the PyTorch module exactly)
# --------------------------------------------------------------------------
def direct_current_reference(x, weight, fuse_w, fuse_b):
    n, c, h, w = x.shape
    dc = jnp.mean(x, axis=(2, 3), keepdims=True)
    z = (x - dc) + dc * weight.reshape(1, c, 1, 1)
    zp = jnp.pad(z, ((0, 0), (0, 0), (1, 1), (1, 1)))
    wk = fuse_w.reshape(c, 3, 3)
    out = jnp.broadcast_to(fuse_b.reshape(1, c, 1, 1), x.shape)
    for ki in range(3):
        for kj in range(3):
            out = out + wk[:, ki, kj].reshape(1, c, 1, 1) * \
                zp[:, :, ki:ki + h, kj:kj + w]
    return x + out


# --------------------------------------------------------------------------
if __name__ == "__main__":
    key = jax.random.PRNGKey(0)
    N, C, H, W = 2, 4, 16, 16
    k0, k1, k2, k3 = jax.random.split(key, 4)

    x = jax.random.normal(k0, (N, C, H, W), jnp.float32)
    weight = jnp.ones((C, 1, 1), jnp.float32) + \
        0.1 * jax.random.normal(k1, (C, 1, 1), jnp.float32)
    fuse_w = 0.1 * jax.random.normal(k2, (C, 1, 3, 3), jnp.float32)
    fuse_b = 0.1 * jax.random.normal(k3, (C,), jnp.float32)

    out = direct_current(x, weight, fuse_w, fuse_b)
    out = jax.block_until_ready(out)
    assert out.shape == (N, C, H, W) and out.dtype == jnp.float32

    ref = direct_current_reference(x, weight, fuse_w, fuse_b)
    err = float(jnp.max(jnp.abs(out - ref)))
    assert err < 1e-4, f"max abs error vs reference: {err}"

    print("KERNEL_OK")
</pallas_src>

<mosaic_0001>
module attributes {stable_mosaic.version = 11 : i64} {
  func.func @_dc_kernel(%arg0: i32, %arg1: memref<8x256xf32, #tpu.memory_space<vmem>>, %arg2: memref<8x16xf32, #tpu.memory_space<vmem>>, %arg3: memref<4x256xf32, #tpu.memory_space<vmem>>, %arg4: memref<8x256xf32, #tpu.memory_space<vmem>>) attributes {dimension_semantics = [#tpu.dimension_semantics<parallel>], iteration_bounds = array<i64: 1>, scalar_prefetch = 0 : i64, scratch_operands = 0 : i64, tpu.core_type = #tpu.core_type<tc>, window_params = [{transform_indices = @transform_0, window_bounds = array<i64: 8, 256>}, {transform_indices = @transform_1, window_bounds = array<i64: 8, 16>}, {pipeline_mode = #tpu.pipeline_mode<synchronous>, transform_indices = @transform_2, window_bounds = array<i64: 4, 256>}, {transform_indices = @transform_3, window_bounds = array<i64: 8, 256>}]} {
    %c0 = arith.constant 0 : index
    %c0_0 = arith.constant 0 : index
    %0 = vector.load %arg1[%c0, %c0_0] : memref<8x256xf32, #tpu.memory_space<vmem>>, vector<8x256xf32>
    %c0_1 = arith.constant 0 : index
    %c0_2 = arith.constant 0 : index
    %1 = vector.load %arg2[%c0_1, %c0_2] : memref<8x16xf32, #tpu.memory_space<vmem>>, vector<8x16xf32>
    %c0_3 = arith.constant 0 : index
    %c0_4 = arith.constant 0 : index
    %2 = vector.load %arg3[%c0_3, %c0_4] : memref<4x256xf32, #tpu.memory_space<vmem>>, vector<4x256xf32>
    %cst = arith.constant dense<0.000000e+00> : vector<8xf32>
    %3 = vector.multi_reduction <add>, %0, %cst [1] : vector<8x256xf32> to vector<8xf32>
    %4 = vector.shape_cast %3 : vector<8xf32> to vector<8x1xf32>
    %cst_5 = arith.constant 3.906250e-03 : f32
    %5 = vector.broadcast %cst_5 : f32 to vector<8x1xf32>
    %6 = arith.mulf %4, %5 : vector<8x1xf32>
    %7 = vector.extract_strided_slice %1 {offsets = [0, 0], sizes = [8, 1], strides = [1, 1]} : vector<8x16xf32> to vector<8x1xf32>
    %8 = arith.mulf %6, %7 : vector<8x1xf32>
    %9 = vector.broadcast %8 : vector<8x1xf32> to vector<8x256xf32>
    %10 = arith.addf %0, %9 : vector<8x256xf32>
    %c1_i32 = arith.constant 1 : i32
    %11 = tpu.dynamic_rotate %10 by %c1_i32 dim 1 : vector<8x256xf32>, i32 -> vector<8x256xf32>
    %12 = vector.extract_strided_slice %2 {offsets = [0, 0], sizes = [1, 256], strides = [1, 1]} : vector<4x256xf32> to vector<1x256xf32>
    %13 = vector.broadcast %12 : vector<1x256xf32> to vector<8x256xf32>
    %14 = arith.mulf %11, %13 : vector<8x256xf32>
    %c255_i32 = arith.constant 255 : i32
    %15 = tpu.dynamic_rotate %10 by %c255_i32 dim 1 : vector<8x256xf32>, i32 -> vector<8x256xf32>
    %16 = vector.extract_strided_slice %2 {offsets = [1, 0], sizes = [1, 256], strides = [1, 1]} : vector<4x256xf32> to vector<1x256xf32>
    %17 = vector.broadcast %16 : vector<1x256xf32> to vector<8x256xf32>
    %18 = arith.mulf %15, %17 : vector<8x256xf32>
    %19 = vector.extract_strided_slice %1 {offsets = [0, 1], sizes = [8, 1], strides = [1, 1]} : vector<8x16xf32> to vector<8x1xf32>
    %20 = vector.broadcast %19 : vector<8x1xf32> to vector<8x256xf32>
    %21 = arith.mulf %20, %14 : vector<8x256xf32>
    %22 = vector.extract_strided_slice %1 {offsets = [0, 2], sizes = [8, 1], strides = [1, 1]} : vector<8x16xf32> to vector<8x1xf32>
    %23 = vector.broadcast %22 : vector<8x1xf32> to vector<8x256xf32>
    %24 = arith.mulf %23, %10 : vector<8x256xf32>
    %25 = arith.addf %21, %24 : vector<8x256xf32>
    %26 = vector.extract_strided_slice %1 {offsets = [0, 3], sizes = [8, 1], strides = [1, 1]} : vector<8x16xf32> to vector<8x1xf32>
    %27 = vector.broadcast %26 : vector<8x1xf32> to vector<8x256xf32>
    %28 = arith.mulf %27, %18 : vector<8x256xf32>
    %29 = arith.addf %25, %28 : vector<8x256xf32>
    %30 = vector.extract_strided_slice %1 {offsets = [0, 4], sizes = [8, 1], strides = [1, 1]} : vector<8x16xf32> to vector<8x1xf32>
    %31 = vector.broadcast %30 : vector<8x1xf32> to vector<8x256xf32>
    %32 = arith.mulf %31, %14 : vector<8x256xf32>
    %33 = vector.extract_strided_slice %1 {offsets = [0, 5], sizes = [8, 1], strides = [1, 1]} : vector<8x16xf32> to vector<8x1xf32>
    %34 = vector.broadcast %33 : vector<8x1xf32> to vector<8x256xf32>
    %35 = arith.mulf %34, %10 : vector<8x256xf32>
    %36 = arith.addf %32, %35 : vector<8x256xf32>
    %37 = vector.extract_strided_slice %1 {offsets = [0, 6], sizes = [8, 1], strides = [1, 1]} : vector<8x16xf32> to vector<8x1xf32>
    %38 = vector.broadcast %37 : vector<8x1xf32> to vector<8x256xf32>
    %39 = arith.mulf %38, %18 : vector<8x256xf32>
    %40 = arith.addf %36, %39 : vector<8x256xf32>
    %41 = vector.extract_strided_slice %1 {offsets = [0, 7], sizes = [8, 1], strides = [1, 1]} : vector<8x16xf32> to vector<8x1xf32>
    %42 = vector.broadcast %41 : vector<8x1xf32> to vector<8x256xf32>
    %43 = arith.mulf %42, %14 : vector<8x256xf32>
    %44 = vector.extract_strided_slice %1 {offsets = [0, 8], sizes = [8, 1], strides = [1, 1]} : vector<8x16xf32> to vector<8x1xf32>
    %45 = vector.broadcast %44 : vector<8x1xf32> to vector<8x256xf32>
    %46 = arith.mulf %45, %10 : vector<8x256xf32>
    %47 = arith.addf %43, %46 : vector<8x256xf32>
    %48 = vector.extract_strided_slice %1 {offsets = [0, 9], sizes = [8, 1], strides = [1, 1]} : vector<8x16xf32> to vector<8x1xf32>
    %49 = vector.broadcast %48 : vector<8x1xf32> to vector<8x256xf32>
    %50 = arith.mulf %49, %18 : vector<8x256xf32>
    %51 = arith.addf %47, %50 : vector<8x256xf32>
    %52 = vector.extract_strided_slice %1 {offsets = [0, 10], sizes = [8, 1], strides = [1, 1]} : vector<8x16xf32> to vector<8x1xf32>
    %53 = vector.broadcast %52 : vector<8x1xf32> to vector<8x256xf32>
    %54 = arith.addf %53, %40 : vector<8x256xf32>
    %c16_i32 = arith.constant 16 : i32
    %55 = tpu.dynamic_rotate %29 by %c16_i32 dim 1 : vector<8x256xf32>, i32 -> vector<8x256xf32>
    %56 = vector.extract_strided_slice %2 {offsets = [2, 0], sizes = [1, 256], strides = [1, 1]} : vector<4x256xf32> to vector<1x256xf32>
    %57 = vector.broadcast %56 : vector<1x256xf32> to vector<8x256xf32>
    %58 = arith.mulf %55, %57 : vector<8x256xf32>
    %59 = arith.addf %54, %58 : vector<8x256xf32>
    %c240_i32 = arith.constant 240 : i32
    %60 = tpu.dynamic_rotate %51 by %c240_i32 dim 1 : vector<8x256xf32>, i32 -> vector<8x256xf32>
    %61 = vector.extract_strided_slice %2 {offsets = [3, 0], sizes = [1, 256], strides = [1, 1]} : vector<4x256xf32> to vector<1x256xf32>
    %62 = vector.broadcast %61 : vector<1x256xf32> to vector<8x256xf32>
    %63 = arith.mulf %60, %62 : vector<8x256xf32>
    %64 = arith.addf %59, %63 : vector<8x256xf32>
    %65 = arith.addf %0, %64 : vector<8x256xf32>
    %c0_6 = arith.constant 0 : index
    %c0_7 = arith.constant 0 : index
    %66 = vector.load %arg4[%c0_6, %c0_7] : memref<8x256xf32, #tpu.memory_space<vmem>>, vector<8x256xf32>
    tpu.vector_store %arg4[%c0_6, %c0_7], %65 {strides = array<i32>} : memref<8x256xf32, #tpu.memory_space<vmem>>, vector<8x256xf32>,
    return
  }
  func.func @transform_0(%arg0: i32) -> (i32, i32) {
    %c0_i32 = arith.constant 0 : i32
    %c0_i32_0 = arith.constant 0 : i32
    return %arg0, %c0_i32 : i32, i32
  }
  func.func @transform_1(%arg0: i32) -> (i32, i32) {
    %c0_i32 = arith.constant 0 : i32
    %c0_i32_0 = arith.constant 0 : i32
    return %arg0, %c0_i32 : i32, i32
  }
  func.func @transform_2(%arg0: i32) -> (i32, i32) {
    %c0_i32 = arith.constant 0 : i32
    %c0_i32_0 = arith.constant 0 : i32
    %c0_i32_1 = arith.constant 0 : i32
    return %c0_i32, %c0_i32_0 : i32, i32
  }
  func.func @transform_3(%arg0: i32) -> (i32, i32) {
    %c0_i32 = arith.constant 0 : i32
    %c0_i32_0 = arith.constant 0 : i32
    return %arg0, %c0_i32 : i32, i32
  }
}

</mosaic_0001>

<llo_original>
// kernel: direct_current_forward.1
$region0: #{direct_current_forward.1}
  #allocation0 [shape = 'u32[]', space=smem, size = 0x4, offset = 0x4, fixed_abs, tag = 'smem constant byte address 0x4 - core index']
  #allocation1 [shape = 'u32[144,128]{1,0:T(1,128)}', space=vmem, size = 0x12000, scoped, tag = 'internal scratch']
  %s0 = inlined_call_operand.vmem [shape: f32[8,256], index: 0, kind: input, shape index: {}]
  %s1 = inlined_call_operand.vmem [shape: f32[8,16], index: 1, kind: input, shape index: {}]
  %s2 = inlined_call_operand.vmem [shape: f32[4,256], index: 2, kind: input, shape index: {}]
  %s3 = inlined_call_operand.vmem [shape: f32[8,256], index: 3, kind: output, shape index: {}]
  %s4 = sld [smem:[#allocation0]]
  $region22: #{direct_current_forward.1} parent=0
    _
  %s6 = ssub.s32 1, %s4
  %s7 = scalar_select 0, %s6, %s4
  // Predicated region
  $region2: #{direct_current_forward.1} parent=0 // pred_check
    _
  $region3: #{direct_current_forward.1} parent=0 // pred_check_branch
    %9 = sbr.rel (0) target = $region5
  $region4: #{direct_current_forward.1} parent=0 // pred_region
    _
  $region5: #{direct_current_forward.1} parent=0 // pred_fallthru
    _
  // Predicated region
  $region6: #{direct_current_forward.1} parent=0 // pred_check
    _
  $region7: #{direct_current_forward.1} parent=0 // pred_check_branch
    %11 = sbr.rel (0) target = $region9
  $region8: #{direct_current_forward.1} parent=0 // pred_region
    _
  $region9: #{direct_current_forward.1} parent=0 // pred_fallthru
    _
  // Predicated region
  $region10: #{direct_current_forward.1} parent=0 // pred_check
    _
  $region11: #{direct_current_forward.1} parent=0 // pred_check_branch
    %13 = sbr.rel (0) target = $region13
  $region12: #{direct_current_forward.1} parent=0 // pred_region
    _
  $region13: #{direct_current_forward.1} parent=0 // pred_fallthru
    _
  %v14 = vld [vmem:[%s0] sm:$0xff]
  %v15 = vld [vmem:[%s0 + $0x8] sm:$0xff]
  %v16 = vld [vmem:[%s1] sm:$0xff]
  %v17 = vld [vmem:[%s2] sm:$0xff]
  %v18 = vadd.f32 %v14, %v15
  %19 = vadd.xlane.f32.xlu0 %v18
  %v20 = vpop.xlane.xlu0 %19
  %v21 = vmul.f32 %v20, 0.00390625
  %v22 = vmul.f32 %v21, %v16
  %24 = vset.pattern.permute.xlu0 0
  %25 = vperm.xlu0 %24, %v22
  %v26 = vpop.permute.xlu0 %25
  %v28 = vadd.f32 %v14, %v26
  %v29 = vadd.f32 %v15, %v26
  %30 = vrot.lane.b32.xlu0 %v28, 1
  %v31 = vpop.permute.xlu0 %30
  %32 = vrot.lane.b32.xlu0 %v29, 1
  %v33 = vpop.permute.xlu0 %32
  %v34 = vlaneseq
  %v35 = vand.u32 %v34, 127
  %vm36 = vcmp.lt.s32.totalorder %v35, 1
  %v37 = vsel %vm36, %v31, %v33
  %v38 = vsel %vm36, %v33, %v31
  %v40 = vlaneseq
  %v41 = vshrl.u32 %v40, 7
  %v42 = vsub.s32 0, %v41
  %v43 = vrot.slane %v17, %v42
  %v44 = vlaneseq
  %v45 = vshrl.u32 %v44, 7
  %v46 = vsub.s32 4, %v45
  %v47 = vrot.slane %v17, %v46
  %v50 = vlaneseq
  %v51 = vshrl.u32 %v50, 7
  %v52 = vsub.s32 0, %v51
  %v53 = vrot.slane %v43, %v52
  %v54 = vlaneseq
  %v55 = vshrl.u32 %v54, 7
  %v56 = vsub.s32 0, %v55
  %v57 = vrot.slane %v47, %v56
  %v58 = vmul.f32 %v38, %v53
  %v59 = vmul.f32 %v37, %v57
  %60 = vrot.lane.b32.xlu0 %v28, 127
  %v61 = vpop.permute.xlu0 %60
  %62 = vrot.lane.b32.xlu0 %v29, 127
  %v63 = vpop.permute.xlu0 %62
  %vm64 = vcmp.lt.s32.totalorder %v35, 127
  %v65 = vsel %vm64, %v61, %v63
  %v66 = vsel %vm64, %v63, %v61
  %v67 = vlaneseq
  %v68 = vshrl.u32 %v67, 7
  %v69 = vsub.s32 1, %v68
  %v70 = vrot.slane %v17, %v69
  %v71 = vlaneseq
  %v72 = vshrl.u32 %v71, 7
  %v73 = vsub.s32 5, %v72
  %v74 = vrot.slane %v17, %v73
  %v77 = vlaneseq
  %v78 = vshrl.u32 %v77, 7
  %v79 = vsub.s32 1, %v78
  %v80 = vrot.slane %v70, %v79
  %v81 = vlaneseq
  %v82 = vshrl.u32 %v81, 7
  %v83 = vsub.s32 1, %v82
  %v84 = vrot.slane %v74, %v83
  %v85 = vmul.f32 %v65, %v80
  %v86 = vmul.f32 %v66, %v84
  %88 = vset.pattern.permute.xlu0 1
  %89 = vperm.xlu0 %88, %v16
  %v90 = vpop.permute.xlu0 %89
  %v92 = vmul.f32 %v90, %v58
  %v93 = vmul.f32 %v90, %v59
  %94 = vset.pattern.permute.xlu0 2
  %95 = vperm.xlu0 %94, %v16
  %v96 = vpop.permute.xlu0 %95
  %v98 = vmul.f32 %v96, %v28
  %v99 = vmul.f32 %v96, %v29
  %v100 = vadd.f32 %v92, %v98
  %v101 = vadd.f32 %v93, %v99
  %102 = vset.pattern.permute.xlu0 3
  %103 = vperm.xlu0 %102, %v16
  %v104 = vpop.permute.xlu0 %103
  %v106 = vmul.f32 %v104, %v85
  %v107 = vmul.f32 %v104, %v86
  %v108 = vadd.f32 %v100, %v106
  %v109 = vadd.f32 %v101, %v107
  %110 = vset.pattern.permute.xlu0 4
  %111 = vperm.xlu0 %110, %v16
  %v112 = vpop.permute.xlu0 %111
  %v114 = vmul.f32 %v112, %v58
  %v115 = vmul.f32 %v112, %v59
  %116 = vset.pattern.permute.xlu0 5
  %117 = vperm.xlu0 %116, %v16
  %v118 = vpop.permute.xlu0 %117
  %v120 = vmul.f32 %v118, %v28
  %v121 = vmul.f32 %v118, %v29
  %v122 = vadd.f32 %v114, %v120
  %v123 = vadd.f32 %v115, %v121
  %124 = vset.pattern.permute.xlu0 6
  %125 = vperm.xlu0 %124, %v16
  %v126 = vpop.permute.xlu0 %125
  %v128 = vmul.f32 %v126, %v85
  %v129 = vmul.f32 %v126, %v86
  %v130 = vadd.f32 %v122, %v128
  %v131 = vadd.f32 %v123, %v129
  %132 = vset.pattern.permute.xlu0 7
  %133 = vperm.xlu0 %132, %v16
  %v134 = vpop.permute.xlu0 %133
  %v136 = vmul.f32 %v134, %v58
  %v137 = vmul.f32 %v134, %v59
  %138 = vset.pattern.permute.xlu0 8
  %139 = vperm.xlu0 %138, %v16
  %v140 = vpop.permute.xlu0 %139
  %v142 = vmul.f32 %v140, %v28
  %v143 = vmul.f32 %v140, %v29
  %v144 = vadd.f32 %v136, %v142
  %v145 = vadd.f32 %v137, %v143
  %146 = vset.pattern.permute.xlu0 9
  %147 = vperm.xlu0 %146, %v16
  %v148 = vpop.permute.xlu0 %147
  %v150 = vmul.f32 %v148, %v85
  %v151 = vmul.f32 %v148, %v86
  %v152 = vadd.f32 %v144, %v150
  %v153 = vadd.f32 %v145, %v151
  %154 = vset.pattern.permute.xlu0 10
  %155 = vperm.xlu0 %154, %v16
  %v156 = vpop.permute.xlu0 %155
  %v158 = vadd.f32 %v156, %v130
  %v159 = vadd.f32 %v156, %v131
  %160 = vrot.lane.b32.xlu0 %v108, 16
  %v161 = vpop.permute.xlu0 %160
  %162 = vrot.lane.b32.xlu0 %v109, 16
  %v163 = vpop.permute.xlu0 %162
  %vm164 = vcmp.lt.s32.totalorder %v35, 16
  %v165 = vsel %vm164, %v161, %v163
  %v166 = vsel %vm164, %v163, %v161
  %v167 = vlaneseq
  %v168 = vshrl.u32 %v167, 7
  %v169 = vsub.s32 2, %v168
  %v170 = vrot.slane %v17, %v169
  %v171 = vlaneseq
  %v172 = vshrl.u32 %v171, 7
  %v173 = vsub.s32 6, %v172
  %v174 = vrot.slane %v17, %v173
  %v177 = vlaneseq
  %v178 = vshrl.u32 %v177, 7
  %v179 = vsub.s32 2, %v178
  %v180 = vrot.slane %v170, %v179
  %v181 = vlaneseq
  %v182 = vshrl.u32 %v181, 7
  %v183 = vsub.s32 2, %v182
  %v184 = vrot.slane %v174, %v183
  %v185 = vmul.f32 %v166, %v180
  %v186 = vmul.f32 %v165, %v184
  %v187 = vadd.f32 %v158, %v185
  %v188 = vadd.f32 %v159, %v186
  %189 = vrot.lane.b32.xlu0 %v152, 112
  %v190 = vpop.permute.xlu0 %189
  %191 = vrot.lane.b32.xlu0 %v153, 112
  %v192 = vpop.permute.xlu0 %191
  %vm193 = vcmp.lt.s32.totalorder %v35, 112
  %v194 = vsel %vm193, %v190, %v192
  %v195 = vsel %vm193, %v192, %v190
  %v196 = vlaneseq
  %v197 = vshrl.u32 %v196, 7
  %v198 = vsub.s32 3, %v197
  %v199 = vrot.slane %v17, %v198
  %v200 = vlaneseq
  %v201 = vshrl.u32 %v200, 7
  %v202 = vsub.s32 7, %v201
  %v203 = vrot.slane %v17, %v202
  %v206 = vlaneseq
  %v207 = vshrl.u32 %v206, 7
  %v208 = vsub.s32 3, %v207
  %v209 = vrot.slane %v199, %v208
  %v210 = vlaneseq
  %v211 = vshrl.u32 %v210, 7
  %v212 = vsub.s32 3, %v211
  %v213 = vrot.slane %v203, %v212
  %v214 = vmul.f32 %v194, %v209
  %v215 = vmul.f32 %v195, %v213
  %v216 = vadd.f32 %v187, %v214
  %v217 = vadd.f32 %v188, %v215
  %v218 = vadd.f32 %v14, %v216
  %v219 = vadd.f32 %v15, %v217
  %220 = vst [vmem:[%s3] sm:$0xff] %v218
  %221 = vst [vmem:[%s3 + $0x8] sm:$0xff] %v219
  // Predicated region
  $region14: #{direct_current_forward.1} parent=0 // pred_check
    _
  $region15: #{direct_current_forward.1} parent=0 // pred_check_branch
    %223 = sbr.rel (0) target = $region17
  $region16: #{direct_current_forward.1} parent=0 // pred_region
    _
  $region17: #{direct_current_forward.1} parent=0 // pred_fallthru
    _
  // Predicated region
  $region18: #{direct_current_forward.1} parent=0 // pred_check
    _
  $region19: #{direct_current_forward.1} parent=0 // pred_check_branch
    %225 = sbr.rel (0) target = $region21
  $region20: #{direct_current_forward.1} parent=0 // pred_region
    _
  $region21: #{direct_current_forward.1} parent=0 // pred_fallthru
    _

</llo_original>
